<compile_context>
chip_gen: v6e
topology: v6e:2x2x1
jax: 0.10.0
libtpu: 0.0.40
codegen_flags: <defaults>
</compile_context>

<pallas_src>
import functools

import jax
import jax.numpy as jnp
from jax.experimental import pallas as pl
from jax.experimental.pallas import tpu as pltpu

_NUM_CLASSES = 2
_LANES = 128
_MAX_TILE_M = 2048  # (2048, 128) f32 block = 1 MiB


def _mse_reduce_kernel(score_ref, label_ref, out_ref, acc_ref, *, n_elems, tile_m):
    """Accumulate sum((score - one_hot(label))^2) into a VMEM vreg accumulator."""
    c = pl.program_id(0)          # parallel split (megacore)
    s = pl.program_id(1)          # reduction steps within the split

    @pl.when(s == 0)
    def _():
        acc_ref[...] = jnp.zeros_like(acc_ref)

    x = score_ref[...].astype(jnp.float32)                       # (tile_m, 128)
    lbl = label_ref[...].astype(jnp.int32)                       # (tile_m, 128)
    lane = jax.lax.broadcasted_iota(jnp.int32, x.shape, 1)
    onehot = ((lane & 1) == lbl).astype(jnp.float32)             # class id = lane parity
    d = x - onehot

    # Logical flat element index -> mask padded / out-of-bounds tail.
    blk = c * pl.num_programs(1) + s
    row = blk * tile_m + jax.lax.broadcasted_iota(jnp.int32, x.shape, 0)
    flat = row * _LANES + lane
    valid = flat < n_elems
    acc_ref[...] += jnp.where(valid, d * d, 0.0)                 # pure VPU adds per step

    @pl.when(s == pl.num_programs(1) - 1)
    def _():
        # One cross-sublane reduction per split; cross-lane finish in wrapper.
        per_lane = jnp.sum(acc_ref[...], axis=0, keepdims=True)  # (1, 128)
        row8 = jax.lax.broadcasted_iota(jnp.int32, (8, _LANES), 0)
        out_ref[...] = jnp.where(row8 == 0,
                                 jnp.broadcast_to(per_lane, (8, _LANES)),
                                 jnp.zeros((8, _LANES), jnp.float32))


def _mse_elementwise_kernel(score_ref, label_ref, out_ref):
    """Per-element squared error (reduction='none'), lane-dense output."""
    x = score_ref[...].astype(jnp.float32)
    lbl = label_ref[...].astype(jnp.int32)
    lane = jax.lax.broadcasted_iota(jnp.int32, x.shape, 1)
    onehot = ((lane & 1) == lbl).astype(jnp.float32)
    d = x - onehot
    out_ref[...] = d * d


def l2_loss(cls_score, label, weight=None, reduction='mean', reduction_override=None):
    assert reduction_override in (None, 'none', 'mean', 'sum')
    assert weight is None  # TODO(synk): original module misuses `weight` as size_average; only None supported.
    reduction = reduction_override if reduction_override else reduction

    n, c = cls_score.shape
    assert c == _NUM_CLASSES
    n_elems = n * _NUM_CLASSES

    # ---- lane-dense layout: (N, 2) -> (M, 128), labels repeated per class as int8.
    score_flat = cls_score.reshape(-1)                                   # free reshape, no dtype copy
    label_rep = jnp.broadcast_to(label.astype(jnp.int8)[:, None],
                                 (n, _NUM_CLASSES)).reshape(-1)
    pad = (-n_elems) % (8 * _LANES)                                      # keep M a multiple of 8
    if pad:
        score_flat = jnp.pad(score_flat, (0, pad))
        label_rep = jnp.pad(label_rep, (0, pad))
    m = (n_elems + pad) // _LANES
    score2d = score_flat.reshape(m, _LANES)
    label2d = label_rep.reshape(m, _LANES)

    tile_m = m if m <= _MAX_TILE_M else _MAX_TILE_M                      # single block for small N
    n_blocks = (m + tile_m - 1) // tile_m

    if reduction == 'none':
        out = pl.pallas_call(
            _mse_elementwise_kernel,
            grid=(n_blocks,),
            in_specs=[pl.BlockSpec((tile_m, _LANES), lambda i: (i, 0)),
                      pl.BlockSpec((tile_m, _LANES), lambda i: (i, 0))],
            out_specs=pl.BlockSpec((tile_m, _LANES), lambda i: (i, 0)),
            out_shape=jax.ShapeDtypeStruct((m, _LANES), jnp.float32),
            compiler_params=pltpu.CompilerParams(
                dimension_semantics=("parallel",)),
        )(score2d, label2d)
        return out.reshape(-1)[:n_elems].reshape(n, _NUM_CLASSES)

    # ---- reduce path ('mean' / 'sum')
    num_splits = 2 if n_blocks > 1 else 1      # both v7x TensorCores stream half each
    steps = (n_blocks + num_splits - 1) // num_splits

    def blk_map(cc, ss):
        # Clamp so a padded tail step never indexes past the last real block;
        # its contribution is zeroed by the in-kernel validity mask.
        return (jnp.minimum(cc * steps + ss, n_blocks - 1), 0)

    kernel = functools.partial(_mse_reduce_kernel, n_elems=n_elems, tile_m=tile_m)
    out = pl.pallas_call(
        kernel,
        grid=(num_splits, steps),
        in_specs=[pl.BlockSpec((tile_m, _LANES), blk_map),
                  pl.BlockSpec((tile_m, _LANES), blk_map)],
        out_specs=pl.BlockSpec((8, _LANES), lambda cc, ss: (cc, 0)),
        out_shape=jax.ShapeDtypeStruct((8 * num_splits, _LANES), jnp.float32),
        scratch_shapes=[pltpu.VMEM((tile_m, _LANES), jnp.float32)],
        compiler_params=pltpu.CompilerParams(
            dimension_semantics=("parallel", "arbitrary")),
    )(score2d, label2d)

    total = jnp.sum(out)
    if reduction == 'mean':
        total = total / jnp.float32(n_elems)
    return total


if __name__ == "__main__":
    key = jax.random.PRNGKey(0)
    k1, k2, k3, k4 = jax.random.split(key, 4)

    # Small shape consistent with the module: cls_score (N, 2), label (N,)
    N = 16
    cls_score = jax.random.normal(k1, (N, _NUM_CLASSES), dtype=jnp.float32)
    label = jax.random.randint(k2, (N,), 0, _NUM_CLASSES, dtype=jnp.int32)

    onehot_ref = jax.nn.one_hot(label, _NUM_CLASSES, dtype=jnp.float32)
    ref_mean = jnp.mean((cls_score - onehot_ref) ** 2)
    ref_sum = jnp.sum((cls_score - onehot_ref) ** 2)
    ref_none = (cls_score - onehot_ref) ** 2

    out_mean = jax.block_until_ready(l2_loss(cls_score, label, reduction='mean'))
    out_sum = jax.block_until_ready(l2_loss(cls_score, label, reduction='sum'))
    out_none = jax.block_until_ready(l2_loss(cls_score, label, reduction='none'))

    assert jnp.allclose(out_mean, ref_mean, rtol=1e-5, atol=1e-5)
    assert jnp.allclose(out_sum, ref_sum, rtol=1e-5, atol=1e-5)
    assert jnp.allclose(out_none, ref_none, rtol=1e-5, atol=1e-5)

    # Larger, ragged shape: exercises multi-block tiling, the 2-way parallel
    # split and the in-kernel tail mask.
    N2 = 140_003
    cls2 = jax.random.normal(k3, (N2, _NUM_CLASSES), dtype=jnp.float32)
    lbl2 = jax.random.randint(k4, (N2,), 0, _NUM_CLASSES, dtype=jnp.int32)
    oh2 = jax.nn.one_hot(lbl2, _NUM_CLASSES, dtype=jnp.float32)
    ref2_mean = jnp.mean((cls2 - oh2) ** 2)
    ref2_sum = jnp.sum((cls2 - oh2) ** 2)

    out2_mean = jax.block_until_ready(l2_loss(cls2, lbl2, reduction='mean'))
    out2_sum = jax.block_until_ready(l2_loss(cls2, lbl2, reduction='sum'))

    assert jnp.allclose(out2_mean, ref2_mean, rtol=1e-4, atol=1e-6)
    assert jnp.allclose(out2_sum, ref2_sum, rtol=1e-4, atol=1e-2)

    print("KERNEL_OK")
</pallas_src>

<mosaic_0001>
module attributes {stable_mosaic.version = 11 : i64} {
  func.func @_mse_reduce_kernel(%arg0: i32, %arg1: i32, %arg2: memref<8x128xf32, #tpu.memory_space<vmem>>, %arg3: memref<8x128xi8, #tpu.memory_space<vmem>>, %arg4: memref<8x128xf32, #tpu.memory_space<vmem>>, %arg5: memref<8x128xf32, #tpu.memory_space<vmem>>) attributes {dimension_semantics = [#tpu.dimension_semantics<parallel>, #tpu.dimension_semantics<arbitrary>], iteration_bounds = array<i64: 1, 1>, scalar_prefetch = 0 : i64, scratch_operands = 1 : i64, tpu.core_type = #tpu.core_type<tc>, window_params = [{transform_indices = @transform_0, window_bounds = array<i64: 8, 128>}, {transform_indices = @transform_1, window_bounds = array<i64: 8, 128>}, {transform_indices = @transform_2, window_bounds = array<i64: 8, 128>}]} {
    %c0_i32 = arith.constant 0 : i32
    %0 = arith.cmpi eq, %arg1, %c0_i32 : i32
    %1 = arith.extui %0 : i1 to i32
    %c0_i32_0 = arith.constant 0 : i32
    %2 = arith.cmpi ne, %1, %c0_i32_0 : i32
    scf.if %2 {
      %cst_11 = arith.constant 0.000000e+00 : f32
      %33 = vector.broadcast %cst_11 : f32 to vector<8x128xf32>
      %c0_12 = arith.constant 0 : index
      %c0_13 = arith.constant 0 : index
      %34 = vector.load %arg5[%c0_12, %c0_13] : memref<8x128xf32, #tpu.memory_space<vmem>>, vector<8x128xf32>
      tpu.vector_store %arg5[%c0_12, %c0_13], %33 {strides = array<i32>} : memref<8x128xf32, #tpu.memory_space<vmem>>, vector<8x128xf32>,
    } else {
    }
    %c0 = arith.constant 0 : index
    %c0_1 = arith.constant 0 : index
    %3 = vector.load %arg2[%c0, %c0_1] : memref<8x128xf32, #tpu.memory_space<vmem>>, vector<8x128xf32>
    %c0_2 = arith.constant 0 : index
    %c0_3 = arith.constant 0 : index
    %4 = vector.load %arg3[%c0_2, %c0_3] : memref<8x128xi8, #tpu.memory_space<vmem>>, vector<8x128xi8>
    %5 = arith.extsi %4 : vector<8x128xi8> to vector<8x128xi32>
    %6 = tpu.iota {dimensions = array<i32: 1>} : vector<8x128xi32>
    %c1_i32 = arith.constant 1 : i32
    %7 = vector.broadcast %c1_i32 : i32 to vector<8x128xi32>
    %8 = arith.andi %6, %7 : vector<8x128xi32>
    %9 = arith.cmpi eq, %8, %5 : vector<8x128xi32>
    %10 = arith.extui %9 : vector<8x128xi1> to vector<8x128xi32>
    %11 = arith.sitofp %10 : vector<8x128xi32> to vector<8x128xf32>
    %12 = arith.subf %3, %11 : vector<8x128xf32>
    %c1_i32_4 = arith.constant 1 : i32
    %13 = arith.muli %arg0, %c1_i32_4 : i32
    %14 = arith.addi %13, %arg1 : i32
    %c8_i32 = arith.constant 8 : i32
    %15 = arith.muli %14, %c8_i32 : i32
    %16 = tpu.iota {dimensions = array<i32: 0>} : vector<8x128xi32>
    %17 = vector.broadcast %15 : i32 to vector<8x128xi32>
    %18 = arith.addi %17, %16 : vector<8x128xi32>
    %c128_i32 = arith.constant 128 : i32
    %19 = vector.broadcast %c128_i32 : i32 to vector<8x128xi32>
    %20 = arith.muli %18, %19 : vector<8x128xi32>
    %21 = arith.addi %20, %6 : vector<8x128xi32>
    %c32_i32 = arith.constant 32 : i32
    %22 = vector.broadcast %c32_i32 : i32 to vector<8x128xi32>
    %23 = arith.cmpi slt, %21, %22 : vector<8x128xi32>
    %c0_5 = arith.constant 0 : index
    %c0_6 = arith.constant 0 : index
    %24 = vector.load %arg5[%c0_5, %c0_6] : memref<8x128xf32, #tpu.memory_space<vmem>>, vector<8x128xf32>
    %25 = arith.mulf %12, %12 : vector<8x128xf32>
    %cst = arith.constant 0.000000e+00 : f32
    %26 = vector.broadcast %cst : f32 to vector<8x128xf32>
    %27 = arith.select %23, %25, %26 : vector<8x128xi1>, vector<8x128xf32>
    %28 = arith.addf %24, %27 : vector<8x128xf32>
    %c0_7 = arith.constant 0 : index
    %c0_8 = arith.constant 0 : index
    %29 = vector.load %arg5[%c0_7, %c0_8] : memref<8x128xf32, #tpu.memory_space<vmem>>, vector<8x128xf32>
    tpu.vector_store %arg5[%c0_7, %c0_8], %28 {strides = array<i32>} : memref<8x128xf32, #tpu.memory_space<vmem>>, vector<8x128xf32>,
    %c0_i32_9 = arith.constant 0 : i32
    %30 = arith.cmpi eq, %arg1, %c0_i32_9 : i32
    %31 = arith.extui %30 : i1 to i32
    %c0_i32_10 = arith.constant 0 : i32
    %32 = arith.cmpi ne, %31, %c0_i32_10 : i32
    scf.if %32 {
      %c0_11 = arith.constant 0 : index
      %c0_12 = arith.constant 0 : index
      %33 = vector.load %arg5[%c0_11, %c0_12] : memref<8x128xf32, #tpu.memory_space<vmem>>, vector<8x128xf32>
      %cst_13 = arith.constant dense<0.000000e+00> : vector<128xf32>
      %34 = vector.multi_reduction <add>, %33, %cst_13 [0] : vector<8x128xf32> to vector<128xf32>
      %35 = vector.shape_cast %34 : vector<128xf32> to vector<1x128xf32>
      %36 = tpu.iota {dimensions = array<i32: 0>} : vector<8x128xi32>
      %c0_i32_14 = arith.constant 0 : i32
      %37 = vector.broadcast %c0_i32_14 : i32 to vector<8x128xi32>
      %38 = arith.cmpi eq, %36, %37 : vector<8x128xi32>
      %39 = vector.shape_cast %35 : vector<1x128xf32> to vector<1x128xf32>
      %40 = vector.broadcast %39 : vector<1x128xf32> to vector<8x128xf32>
      %cst_15 = arith.constant 0.000000e+00 : f32
      %41 = vector.broadcast %cst_15 : f32 to vector<8x128xf32>
      %42 = arith.select %38, %40, %41 : vector<8x128xi1>, vector<8x128xf32>
      %c0_16 = arith.constant 0 : index
      %c0_17 = arith.constant 0 : index
      %43 = vector.load %arg4[%c0_16, %c0_17] : memref<8x128xf32, #tpu.memory_space<vmem>>, vector<8x128xf32>
      tpu.vector_store %arg4[%c0_16, %c0_17], %42 {strides = array<i32>} : memref<8x128xf32, #tpu.memory_space<vmem>>, vector<8x128xf32>,
    } else {
    }
    return
  }
  func.func @transform_0(%arg0: i32, %arg1: i32) -> (i32, i32) {
    %c1_i32 = arith.constant 1 : i32
    %0 = arith.muli %arg0, %c1_i32 : i32
    %1 = arith.addi %0, %arg1 : i32
    %c0_i32 = arith.constant 0 : i32
    %2 = arith.minsi %1, %c0_i32 : i32
    %c0_i32_0 = arith.constant 0 : i32
    %c0_i32_1 = arith.constant 0 : i32
    return %2, %c0_i32_0 : i32, i32
  }
  func.func @transform_1(%arg0: i32, %arg1: i32) -> (i32, i32) {
    %c1_i32 = arith.constant 1 : i32
    %0 = arith.muli %arg0, %c1_i32 : i32
    %1 = arith.addi %0, %arg1 : i32
    %c0_i32 = arith.constant 0 : i32
    %2 = arith.minsi %1, %c0_i32 : i32
    %c0_i32_0 = arith.constant 0 : i32
    %c0_i32_1 = arith.constant 0 : i32
    return %2, %c0_i32_0 : i32, i32
  }
  func.func @transform_2(%arg0: i32, %arg1: i32) -> (i32, i32) {
    %c0_i32 = arith.constant 0 : i32
    %c0_i32_0 = arith.constant 0 : i32
    return %arg0, %c0_i32 : i32, i32
  }
}

</mosaic_0001>

<llo_original>
// kernel: tpu_custom_call.1
$region0: #{tpu_custom_call.1}
  #allocation0 [shape = 'u32[]', space=smem, size = 0x4, offset = 0x4, fixed_abs, tag = 'smem constant byte address 0x4 - core index']
  #allocation1 [shape = 'u32[144,128]{1,0:T(1,128)}', space=vmem, size = 0x12000, scoped, tag = 'internal scratch']
  #allocation2 [shape = 'f32[8,128]{1,0:T(8,128)}', space=vmem, size = 0x1000, scoped, tag = 'scratch operand']
  %s0 = inlined_call_operand.hbm [shape: f32[8,128], index: 0, kind: input, shape index: {}]
  %s1 = inlined_call_operand.hbm [shape: s8[8,128], index: 1, kind: input, shape index: {}]
  %s2 = inlined_call_operand.hbm [shape: f32[8,128], index: 2, kind: output, shape index: {}]
  %s3 = sld [smem:[#allocation0]]
  $region34: #{tpu_custom_call.1} parent=0
    _
  %s5 = ssub.s32 1, %s3
  %s6 = scalar_select 0, %s5, %s3
  $region1: #{tpu_custom_call.1} parent=0
    #allocation3 [shape = 'u8[4096]{0}', space=vmem, size = 0x1000, scoped, tag = 'input window, operand 0, single buffered']
    #allocation4 [shape = 's32[1]{0}', space=sflag, size = 0x4, scoped, tag = 'scoped memory for tpu_custom_call.1']
    #allocation5 [shape = 's32[1]{0}', space=sflag, size = 0x4, scoped, tag = 'scoped memory for tpu_custom_call.1']
    #allocation6 [shape = 'u8[1024]{0}', space=vmem, size = 0x400, scoped, tag = 'input window, operand 1, single buffered']
    #allocation7 [shape = 's32[1]{0}', space=sflag, size = 0x4, scoped, tag = 'scoped memory for tpu_custom_call.1']
    #allocation8 [shape = 'u8[4096]{0}', space=vmem, size = 0x1000, scoped, tag = 'output window, operand 0, single buffered']
    %7 = vsyncpa [#allocation4], 0
    %8 = vsyncpa [#allocation7], 0
    %9 = vsyncpa [#allocation5], 0
    // Predicated region
    $region2: #{tpu_custom_call.1} parent=1 // pred_check
      _
    $region3: #{tpu_custom_call.1} parent=1 // pred_check_branch
      %11 = sbr.rel (0) target = $region5
    $region4: #{tpu_custom_call.1} parent=1 // pred_region
      %s12 = sadd.s32 0, 0
      %p13 = scmp.lt.s32.totalorder %s12, 0
      %s14 = scalar_select %p13, %s12, 0
      %s16 = ssub.s32 128, 128
      %17 = vsyncadd [#allocation4], %s16
      %s18 = smul.addr %s14, 128
      %s19 = scalar_lea.hbm %s0, %s18
      %s21 = sshll.u32 [#allocation3], 4
      %s22 = int_to_ptr.vmem [resolvable:$true] %s21
      %24 = dma.hbm_to_vmem [thread:$0]  %s19, 128, %s22, [#allocation4]
    $region5: #{tpu_custom_call.1} parent=1 // pred_fallthru
      _
    // Predicated region
    $region6: #{tpu_custom_call.1} parent=1 // pred_check
      _
    $region7: #{tpu_custom_call.1} parent=1 // pred_check_branch
      %26 = sbr.rel (0) target = $region9
    $region8: #{tpu_custom_call.1} parent=1 // pred_region
      %s27 = sadd.s32 0, 0
      %p28 = scmp.lt.s32.totalorder %s27, 0
      %s29 = scalar_select %p28, %s27, 0
      %s31 = ssub.s32 32, 32
      %32 = vsyncadd [#allocation7], %s31
      %s33 = smul.addr %s29, 32
      %s34 = scalar_lea.hbm %s1, %s33
      %s36 = sshll.u32 [#allocation6], 4
      %s37 = int_to_ptr.vmem [resolvable:$true] %s36
      %39 = dma.hbm_to_vmem [thread:$0]  %s34, 32, %s37, [#allocation7]
    $region9: #{tpu_custom_call.1} parent=1 // pred_fallthru
      _
    // Predicated region
    $region10: #{tpu_custom_call.1} parent=1 // pred_check
      _
    $region11: #{tpu_custom_call.1} parent=1 // pred_check_branch
      %41 = sbr.rel (0) target = $region13
    $region12: #{tpu_custom_call.1} parent=1 // pred_region
      %42 = dma.done [#allocation4], 128
    $region13: #{tpu_custom_call.1} parent=1 // pred_fallthru
      _
    // Predicated region
    $region14: #{tpu_custom_call.1} parent=1 // pred_check
      _
    $region15: #{tpu_custom_call.1} parent=1 // pred_check_branch
      %44 = sbr.rel (0) target = $region17
    $region16: #{tpu_custom_call.1} parent=1 // pred_region
      %45 = dma.done [#allocation7], 32
    $region17: #{tpu_custom_call.1} parent=1 // pred_fallthru
      _
    %s46 = sadd.s32 0, 0
    %p47 = scmp.lt.s32.totalorder %s46, 0
    %s48 = scalar_select %p47, %s46, 0
    %s49 = sadd.s32 0, 0
    %p50 = scmp.lt.s32.totalorder %s49, 0
    %s51 = scalar_select %p50, %s49, 0
    %p52 = scmp.eq.s32.totalorder 0, 0
    // Predicated region
    $region18: #{tpu_custom_call.1} parent=1 // pred_check
      %p53 = pneg %p52
    $region19: #{tpu_custom_call.1} parent=1 // pred_check_branch
      %55 = sbr.rel (%p53) target = $region21
    $region20: #{tpu_custom_call.1} parent=1 // pred_region
      %56 = vst [vmem:[#allocation2] sm:$0xff] 0.0
    $region21: #{tpu_custom_call.1} parent=1 // pred_fallthru
      _
    %v57 = vld [vmem:[#allocation3] sm:$0xff]
    %v58 = vld [vmem:[#allocation6] sm:$0x3]
    %v59 = vunpack.c.0.s8 %v58
    %v60 = vlaneseq
    %v61 = vand.u32 %v60, 127
    %v62 = vand.u32 %v61, 1
    %vm63 = vcmp.eq.s32.totalorder %v62, %v59
    %v64 = vsel %vm63, 1, 0
    %v65 = vcvt.s32.f32 %v64
    %v66 = vsub.f32 %v57, %v65
    %s67 = sadd.s32 0, 0
    %s68 = smul.u32 %s67, 8
    %v69 = vlaneseq
    %v70 = vshrl.u32 %v69, 7
    %v71 = vstv %s68
    %v72 = vadd.s32 %v71, %v70
    %v73 = vmul.u32 %v72, 128
    %v74 = vadd.s32 %v73, %v61
    %vm75 = vcmp.lt.s32.totalorder %v74, 32
    %v76 = vld [vmem:[#allocation2] sm:$0xff]
    %v77 = vmul.f32 %v66, %v66
    %v78 = vsel %vm75, %v77, 0.0
    %v79 = vadd.f32 %v76, %v78
    %80 = vst [vmem:[#allocation2] sm:$0xff] %v79
    // Predicated region
    $region22: #{tpu_custom_call.1} parent=1 // pred_check
      %p81 = pneg %p52
    $region23: #{tpu_custom_call.1} parent=1 // pred_check_branch
      %83 = sbr.rel (%p81) target = $region25
    $region24: #{tpu_custom_call.1} parent=1 // pred_region
      %v84 = vld [vmem:[#allocation2] sm:$0xff]
      %v85 = vrot.slane %v84, 4
      %v86 = vadd.f32 %v84, %v85
      %v87 = vrot.slane %v86, 2
      %v88 = vadd.f32 %v86, %v87
      %v89 = vrot.slane %v88, 1
      %v90 = vadd.f32 %v88, %v89
      %vm91 = vcmp.eq.s32.totalorder %v70, 0
      %v92 = vsel %vm91, %v90, 0.0
      %93 = vst [vmem:[#allocation8] sm:$0xff] %v92
    $region25: #{tpu_custom_call.1} parent=1 // pred_fallthru
      _
    // Predicated region
    $region26: #{tpu_custom_call.1} parent=1 // pred_check
      _
    $region27: #{tpu_custom_call.1} parent=1 // pred_check_branch
      %95 = sbr.rel (0) target = $region29
    $region28: #{tpu_custom_call.1} parent=1 // pred_region
      %s97 = ssub.s32 128, 128
      %98 = vsyncadd [#allocation5], %s97
      %s100 = sshll.u32 [#allocation8], 4
      %s101 = int_to_ptr.vmem [resolvable:$true] %s100
      %103 = dma.vmem_to_hbm [thread:$0]  %s101, 128, %s2, [#allocation5]
    $region29: #{tpu_custom_call.1} parent=1 // pred_fallthru
      _
    // Predicated region
    $region30: #{tpu_custom_call.1} parent=1 // pred_check
      _
    $region31: #{tpu_custom_call.1} parent=1 // pred_check_branch
      %105 = sbr.rel (0) target = $region33
    $region32: #{tpu_custom_call.1} parent=1 // pred_region
      %106 = dma.done [#allocation5], 128
    $region33: #{tpu_custom_call.1} parent=1 // pred_fallthru
      _
    %107 = vsyncpa [#allocation4], 1
    %108 = vsyncpa [#allocation7], 1
    %109 = vsyncpa [#allocation5], 1

</llo_original>
